<compile_context>
chip_gen: v7x
topology: tpu7x:2x2x1
jax: 0.10.0
libtpu: 0.0.40
codegen_flags: <defaults>
</compile_context>

<pallas_src>
import math

import jax
import jax.numpy as jnp
from jax.experimental import pallas as pl
from jax.experimental.pallas import tpu as pltpu


def _conv_prelu_kernel(a_ref, w_ref, x_ref, o_ref):
    # a_ref: (1,) in SMEM          -- shared PReLU parameter
    # w_ref: (C2, KC) in VMEM      -- conv weight, KC = C1 * k**3 (resident)
    # x_ref: (1, KC, TS) in VMEM   -- im2col activations (one batch elt / spatial tile)
    # o_ref: (1, C2, TS) in VMEM
    y = jnp.dot(w_ref[...], x_ref[0],
                preferred_element_type=jnp.float32)            # single MXU matmul
    alpha = a_ref[0]                                           # SMEM scalar
    o_ref[0] = jnp.where(y > 0, y, alpha * y).astype(o_ref.dtype)   # PReLU (VPU)


def _cdiv(a, b):
    return -(-a // b)


def _round_up(x, m):
    return _cdiv(x, m) * m


def _pick_spatial_tile(S, N, KC, C2, in_bytes, out_bytes, *,
                       max_ts=4096, vmem_budget=40 << 20, min_steps=8):
    """Largest multiple-of-128 lane tile fitting the VMEM budget, then shrunk
    so the grid has >= min_steps steps (keeps both v7x TCs busy)."""
    per_lane = 2 * in_bytes * KC + 2 * out_bytes * C2     # double-buffered x + out
    w_bytes = 2 * in_bytes * C2 * KC                      # weight (assume 2 buffers)
    avail = max(vmem_budget - w_bytes, 128 * per_lane)
    ts = min(max_ts, max(128, (avail // per_lane) // 128 * 128))
    ts = min(ts, _round_up(S, 128))                       # never exceed padded volume
    while ts > 128 and N * _cdiv(S, ts) < min_steps:
        ts = max(128, ((ts // 2) // 128) * 128)
    return int(ts)


def vnet_down_block_forward(x, params, *, k=2, stride=2,
                            use_bf16=True, out_dtype=jnp.float32):
    """x: (N, C1, D, H, W) float32 (PyTorch NCDHW). Returns (N, C2, Do, Ho, Wo)."""
    if stride != k or (k - 1) // 2 != 0:
        # TODO(synk): only the module-default non-overlapping config
        # (kernel == stride, padding == 0) is implemented.
        raise NotImplementedError("kernel supports k == stride, padding == 0 only")

    w = params["w1"]          # (C2, C1, k, k, k)  PyTorch OIDHW layout
    alpha = params["a1"]      # (1,)               nn.PReLU() shared parameter
    N, C1, D, H, W = x.shape
    C2 = w.shape[0]
    Do, Ho, Wo = D // k, H // k, W // k
    if (D, H, W) != (Do * k, Ho * k, Wo * k):     # PyTorch floors odd extents
        x = x[:, :, :Do * k, :Ho * k, :Wo * k]
    S = Do * Ho * Wo
    KC = C1 * k * k * k

    in_dtype = jnp.bfloat16 if use_bf16 else jnp.float32

    # Space-to-depth == im2col for the non-overlapping k^3 / stride-k conv:
    # (N, C1, D, H, W) -> (N, C1, kd, kh, kw, Do, Ho, Wo) -> (N, KC, S).
    # Tap minor-order (c1, kd, kh, kw) matches w.reshape(C2, KC).
    # allow_input_fusion below lets XLA fuse this producer into the kernel's
    # input DMA instead of materializing it in HBM.
    x_i2c = x.reshape(N, C1, Do, k, Ho, k, Wo, k)
    x_i2c = jnp.transpose(x_i2c, (0, 1, 3, 5, 7, 2, 4, 6)).reshape(N, KC, S)
    x_i2c = x_i2c.astype(in_dtype)
    w_mat = w.reshape(C2, KC).astype(in_dtype)

    in_bytes = jnp.dtype(in_dtype).itemsize
    out_bytes = jnp.dtype(out_dtype).itemsize
    TS = _pick_spatial_tile(S, N, KC, C2, in_bytes, out_bytes)

    # Pad the flattened volume to a multiple of TS (lane-dense, unmasked stores;
    # no single giant fallback block for odd volumes). Zero columns are dropped.
    S_pad = _round_up(S, TS)
    if S_pad != S:
        x_i2c = jnp.pad(x_i2c, ((0, 0), (0, 0), (0, S_pad - S)))

    # Explicit scoped-VMEM limit so large tiles aren't rejected by the default
    # 16 MiB (v5e) / 32 MiB (v6e, v7x) scoped limit; stays under v7x's 64 MiB.
    vmem_needed = (2 * in_bytes * C2 * KC
                   + TS * (2 * in_bytes * KC + 2 * out_bytes * C2)
                   + (4 << 20))
    vmem_limit = int(min(max(32 << 20, vmem_needed), 56 << 20))

    out = pl.pallas_call(
        _conv_prelu_kernel,
        out_shape=jax.ShapeDtypeStruct((N, C2, S_pad), out_dtype),
        grid=(N, S_pad // TS),
        in_specs=[
            pl.BlockSpec(memory_space=pltpu.MemorySpace.SMEM),    # PReLU alpha
            pl.BlockSpec((C2, KC), lambda n, s: (0, 0)),          # weights (resident)
            pl.BlockSpec((1, KC, TS), lambda n, s: (n, 0, s)),    # activation tile
        ],
        out_specs=pl.BlockSpec((1, C2, TS), lambda n, s: (n, 0, s)),
        compiler_params=pltpu.CompilerParams(
            dimension_semantics=("parallel", "parallel"),
            vmem_limit_bytes=vmem_limit,
            allow_input_fusion=[False, False, True],   # fuse im2col into input DMA
        ),
    )(alpha.astype(jnp.float32), w_mat, x_i2c)

    if S_pad != S:
        out = out[:, :, :S]
    return out.reshape(N, C2, Do, Ho, Wo)


def init_vnet_down_block_params(key, ch, k=2, L=1):
    """Mirrors VnetDownBlock.__init__: kaiming_uniform_(fan_out, leaky_relu)/sqrt(L)."""
    ch1, ch2 = ch
    fan_out = ch2 * k * k * k
    gain = math.sqrt(2.0)                       # calculate_gain('leaky_relu', a=0)
    bound = gain * math.sqrt(3.0 / fan_out)
    w = jax.random.uniform(key, (ch2, ch1, k, k, k), jnp.float32, -bound, bound)
    w = w / math.sqrt(L)
    a = jnp.full((1,), 0.25, jnp.float32)       # nn.PReLU() default init
    return {"w1": w, "a1": a}


def _ref_forward(x, params, *, k=2, stride=2):
    """Pure-JAX reference (same semantics as the PyTorch forward)."""
    out = jax.lax.conv_general_dilated(
        x.astype(jnp.float32), params["w1"].astype(jnp.float32),
        window_strides=(stride, stride, stride), padding="VALID",
        dimension_numbers=("NCDHW", "OIDHW", "NCDHW"),
        precision=jax.lax.Precision.HIGHEST)
    a = params["a1"][0]
    return jnp.where(out > 0, out, a * out)


if __name__ == "__main__":
    key = jax.random.PRNGKey(0)
    kx, kw = jax.random.split(key)

    N, C1, C2 = 2, 4, 8
    D = H = W = 16                                 # -> output volume 8*8*8 = 512 lanes

    x = jax.random.normal(kx, (N, C1, D, H, W), jnp.float32)   # NCDHW like PyTorch
    params = init_vnet_down_block_params(kw, (C1, C2), k=2)

    # 1) strict f32 path vs the f32 reference
    out_f32 = jax.block_until_ready(
        vnet_down_block_forward(x, params, k=2, stride=2, use_bf16=False))
    ref = _ref_forward(x, params, k=2, stride=2)
    assert out_f32.shape == (N, C2, D // 2, H // 2, W // 2), out_f32.shape
    if not jnp.allclose(out_f32, ref, atol=1e-3, rtol=1e-3):
        err = float(jnp.max(jnp.abs(out_f32 - ref)))
        raise AssertionError(f"f32 Pallas kernel mismatches reference, max abs err {err}")

    # 2) default bf16-operand path (f32 accumulation) vs a bf16-rounded-operand
    #    f32 reference (isolates MXU operand rounding from accumulation error)
    out_bf16 = jax.block_until_ready(
        vnet_down_block_forward(x, params, k=2, stride=2))      # use_bf16=True default
    params_bf = {"w1": params["w1"].astype(jnp.bfloat16).astype(jnp.float32),
                 "a1": params["a1"]}
    ref_bf = _ref_forward(x.astype(jnp.bfloat16).astype(jnp.float32), params_bf,
                          k=2, stride=2)
    if not jnp.allclose(out_bf16, ref_bf, atol=1e-3, rtol=1e-3):
        err = float(jnp.max(jnp.abs(out_bf16 - ref_bf)))
        raise AssertionError(f"bf16 Pallas kernel mismatches reference, max abs err {err}")

    print("KERNEL_OK")
</pallas_src>

<mosaic_0001>
module attributes {stable_mosaic.version = 11 : i64} {
  func.func @_conv_prelu_kernel(%arg0: i32, %arg1: i32, %arg2: memref<1xf32, #tpu.memory_space<smem>>, %arg3: memref<8x32xf32, #tpu.memory_space<vmem>>, %arg4: memref<1x32x128xf32, #tpu.memory_space<vmem>>, %arg5: memref<1x8x128xf32, #tpu.memory_space<vmem>>) attributes {dimension_semantics = [#tpu.dimension_semantics<parallel>, #tpu.dimension_semantics<parallel>], iteration_bounds = array<i64: 2, 4>, scalar_prefetch = 0 : i64, scratch_operands = 0 : i64, tpu.core_type = #tpu.core_type<tc>, window_params = [{transform_indices = @transform_0, window_bounds = array<i64: 1>}, {pipeline_mode = #tpu.pipeline_mode<synchronous>, transform_indices = @transform_1, window_bounds = array<i64: 8, 32>}, {transform_indices = @transform_2, window_bounds = array<i64: 1, 32, 128>}, {transform_indices = @transform_3, window_bounds = array<i64: 1, 8, 128>}]} {
    %c0 = arith.constant 0 : index
    %c0_0 = arith.constant 0 : index
    %0 = vector.load %arg3[%c0, %c0_0] : memref<8x32xf32, #tpu.memory_space<vmem>>, vector<8x32xf32>
    %c0_1 = arith.constant 0 : index
    %c0_2 = arith.constant 0 : index
    %c0_3 = arith.constant 0 : index
    %1 = vector.load %arg4[%c0_1, %c0_2, %c0_3] : memref<1x32x128xf32, #tpu.memory_space<vmem>>, vector<1x32x128xf32>
    %2 = vector.shape_cast %1 : vector<1x32x128xf32> to vector<32x128xf32>
    %cst = arith.constant dense<0.000000e+00> : vector<8x128xf32>
    %3 = tpu.matmul %0, %2, %cst {dimension_numbers = #tpu.dot_dimension_numbers<[1], [0], [0], [1], [0, 0, 1, 1], [], []>} : vector<8x32xf32>, vector<32x128xf32>, vector<8x128xf32> -> vector<8x128xf32>
    %c0_4 = arith.constant 0 : index
    %4 = memref.load %arg2[%c0_4] : memref<1xf32, #tpu.memory_space<smem>>
    %cst_5 = arith.constant 0.000000e+00 : f32
    %5 = vector.broadcast %cst_5 : f32 to vector<8x128xf32>
    %6 = arith.cmpf ogt, %3, %5 : vector<8x128xf32>
    %7 = vector.broadcast %4 : f32 to vector<8x128xf32>
    %8 = arith.mulf %7, %3 : vector<8x128xf32>
    %9 = arith.select %6, %3, %8 : vector<8x128xi1>, vector<8x128xf32>
    %c0_6 = arith.constant 0 : index
    %c0_7 = arith.constant 0 : index
    %c0_8 = arith.constant 0 : index
    %10 = vector.load %arg5[%c0_6, %c0_7, %c0_8] : memref<1x8x128xf32, #tpu.memory_space<vmem>>, vector<1x8x128xf32>
    %11 = vector.shape_cast %10 : vector<1x8x128xf32> to vector<8x128xf32>
    %12 = vector.shape_cast %9 : vector<8x128xf32> to vector<1x8x128xf32>
    tpu.vector_store %arg5[%c0_6, %c0_7, %c0_8], %12 {strides = array<i32>} : memref<1x8x128xf32, #tpu.memory_space<vmem>>, vector<1x8x128xf32>,
    return
  }
  func.func @transform_0(%arg0: i32, %arg1: i32) -> i32 {
    %c0_i32 = arith.constant 0 : i32
    %c0_i32_0 = arith.constant 0 : i32
    return %c0_i32 : i32
  }
  func.func @transform_1(%arg0: i32, %arg1: i32) -> (i32, i32) {
    %c0_i32 = arith.constant 0 : i32
    %c0_i32_0 = arith.constant 0 : i32
    %c0_i32_1 = arith.constant 0 : i32
    return %c0_i32, %c0_i32_0 : i32, i32
  }
  func.func @transform_2(%arg0: i32, %arg1: i32) -> (i32, i32, i32) {
    %c0_i32 = arith.constant 0 : i32
    %c0_i32_0 = arith.constant 0 : i32
    return %arg0, %c0_i32, %arg1 : i32, i32, i32
  }
  func.func @transform_3(%arg0: i32, %arg1: i32) -> (i32, i32, i32) {
    %c0_i32 = arith.constant 0 : i32
    %c0_i32_0 = arith.constant 0 : i32
    return %arg0, %c0_i32, %arg1 : i32, i32, i32
  }
}

</mosaic_0001>

<llo_original>
// kernel: tpu_custom_call.1
$region0: #{tpu_custom_call.1}
  #allocation0 [shape = 'u32[]', space=smem, size = 0x4, offset = 0x4, fixed_abs, tag = 'smem constant byte address 0x4 - core index']
  #allocation1 [shape = 'u32[144,128]{1,0:T(1,128)}', space=vmem, size = 0x12000, scoped, tag = 'internal scratch']
  #allocation2 [shape = 'f32[1]{0:T(128)S(6)}', space=smem, size = 0x200, scoped, tag = 'scoped memory for tpu_custom_call.1']
  %s0 = inlined_call_operand.<no memory space> [shape: f32[1], index: 0, kind: input, shape index: {}]
  %s1 = inlined_call_operand.hbm [shape: f32[8,32], index: 1, kind: input, shape index: {}]
  %s2 = inlined_call_operand.hbm [shape: f32[2,32,512], index: 2, kind: input, shape index: {}]
  %s3 = inlined_call_operand.hbm [shape: f32[2,8,512], index: 3, kind: output, shape index: {}]
  %s4 = sld [smem:[#allocation0]]
  $region53: #{tpu_custom_call.1} parent=0
    _
  %s6 = ssub.s32 1, %s4
  %s7 = scalar_select 0, %s6, %s4
  %8 = sst [smem:[#allocation2]] %s0
  $region1: #{tpu_custom_call.1} parent=0
    #allocation3 [shape = 'u8[4096]{0}', space=vmem, size = 0x1000, scoped, tag = 'input window, operand 1, single buffered']
    #allocation4 [shape = 's32[2]{0}', space=sflag, size = 0x8, scoped, tag = 'scoped memory for tpu_custom_call.1']
    #allocation5 [shape = 's32[2]{0}', space=sflag, size = 0x8, scoped, tag = 'scoped memory for tpu_custom_call.1']
    #allocation6 [shape = 'u8[32768]{0}', space=vmem, size = 0x8000, scoped, tag = 'input window, operand 2']
    #allocation7 [shape = 's32[2]{0}', space=sflag, size = 0x8, scoped, tag = 'scoped memory for tpu_custom_call.1']
    #allocation8 [shape = 'u8[8192]{0}', space=vmem, size = 0x2000, scoped, tag = 'output window, operand 0']
    %9 = vsyncpa [#allocation4], 0
    %10 = vsyncpa [#allocation7], 0
    %s11 = scalar_lea.sflag [#allocation7], 1
    %12 = vsyncpa %s11, 0
    %13 = vsyncpa [#allocation5], 0
    %s14 = scalar_lea.sflag [#allocation5], 1
    %15 = vsyncpa %s14, 0
    loop: start=0, step=1, limit=10
    $region2: #{tpu_custom_call.1} parent=1 // loop_pre_header
      _
    $region3: #{tpu_custom_call.1} parent=1 // loop_header
      %s17 = sphi 0, %s21
      %p18 = scmp.ge.s32.totalorder %s17, 10
      %s24 = sphi 0, %s36
      %s25 = sphi 0, %s32
      %s26 = sphi 0, %s24
      %s27 = sphi 0, %s25
      %s28 = sphi 0, %s26
      %s29 = sphi 0, %s27
      %s37 = sphi 0, %s37
      %s39 = sphi 0, %s37
      %s40 = sphi 0, %s39
      %s54 = sphi 0, %s40
      %s58 = sphi 0, %s58
      %s60 = sphi 0, %s58
      %s61 = sphi 0, %s60
      %s75 = sphi 0, %s61
      %s83 = sphi 0, %s85
      %s86 = sphi 0, %s83
      %s87 = sphi 0, %s86
      %s103 = sphi 0, %s87
      %s111 = sphi 0, %s113
      %s114 = sphi 0, %s111
      %s115 = sphi 0, %s114
      %s131 = sphi 0, %s115
    $region4: #{tpu_custom_call.1} parent=1 // loop_header_branch
      %20 = sbr.rel (%p18) target = $region8
    $region5: #{tpu_custom_call.1} parent=1 // loop_body
      %s22 = ssub.s32 %s17, 1
      %s23 = ssub.s32 %s17, 2
      %s30 = sadd.s32 1, %s25
      %p31 = scmp.ge.s32.totalorder %s30, 4
      %s32 = scalar_select %p31, 0, %s30
      %s33 = sadd.s32 1, %s24
      %s34 = scalar_select %p31, %s33, %s24
      %p35 = scmp.ge.s32.totalorder %s34, 2
      %s36 = scalar_select %p35, 0, %s34
      %s38 = sadd.s32 %s37, 1
      %p41 = scmp.eq.s32.totalorder %s17, 7
      %p42 = scmp.ne.s32.totalorder %s37, %s39
      %p43 = scmp.eq.s32.totalorder %s17, 0
      %p44 = por %p42, %p43
      %p45 = scmp.ne.s32.totalorder %s37, %s39
      %p46 = scmp.eq.s32.totalorder %s22, 7
      %p47 = por %p45, %p46
      %p48 = scmp.ne.s32.totalorder %s39, %s40
      %p49 = scmp.eq.s32.totalorder %s22, 0
      %p50 = por %p48, %p49
      %p51 = scmp.ne.s32.totalorder %s39, %s40
      %p52 = scmp.eq.s32.totalorder %s23, 7
      %p53 = por %p51, %p52
      %p55 = scmp.ne.s32.totalorder %s40, %s54
      %p56 = scmp.eq.s32.totalorder %s23, 0
      %p57 = por %p55, %p56
      %s59 = sadd.s32 %s58, 1
      %p62 = scmp.eq.s32.totalorder %s17, 7
      %p63 = scmp.ne.s32.totalorder %s58, %s60
      %p64 = scmp.eq.s32.totalorder %s17, 0
      %p65 = por %p63, %p64
      %p66 = scmp.ne.s32.totalorder %s58, %s60
      %p67 = scmp.eq.s32.totalorder %s22, 7
      %p68 = por %p66, %p67
      %p69 = scmp.ne.s32.totalorder %s60, %s61
      %p70 = scmp.eq.s32.totalorder %s22, 0
      %p71 = por %p69, %p70
      %p72 = scmp.ne.s32.totalorder %s60, %s61
      %p73 = scmp.eq.s32.totalorder %s23, 7
      %p74 = por %p72, %p73
      %p76 = scmp.ne.s32.totalorder %s61, %s75
      %p77 = scmp.eq.s32.totalorder %s23, 0
      %p78 = por %p76, %p77
      %s79 = ssub.s32 %s24, %s36
      %s80 = ssub.s32 %s25, %s32
      %s81 = sor.u32 %s79, %s80
      %p82 = scmp.eq.s32.totalorder %s81, 0
      %s84 = sadd.s32 %s83, 1
      %s85 = scalar_select %p82, %s83, %s84
      %p88 = pneg %p82
      %p89 = scmp.eq.s32.totalorder %s17, 7
      %p90 = por %p88, %p89
      %p91 = scmp.ne.s32.totalorder %s83, %s86
      %p92 = scmp.eq.s32.totalorder %s17, 0
      %p93 = por %p91, %p92
      %p94 = scmp.ne.s32.totalorder %s83, %s86
      %p95 = scmp.eq.s32.totalorder %s22, 7
      %p96 = por %p94, %p95
      %p97 = scmp.ne.s32.totalorder %s86, %s87
      %p98 = scmp.eq.s32.totalorder %s22, 0
      %p99 = por %p97, %p98
      %p100 = scmp.ne.s32.totalorder %s86, %s87
      %p101 = scmp.eq.s32.totalorder %s23, 7
      %p102 = por %p100, %p101
      %p104 = scmp.ne.s32.totalorder %s87, %s103
      %p105 = scmp.eq.s32.totalorder %s23, 0
      %p106 = por %p104, %p105
      %s107 = ssub.s32 %s24, %s36
      %s108 = ssub.s32 %s25, %s32
      %s109 = sor.u32 %s107, %s108
      %p110 = scmp.eq.s32.totalorder %s109, 0
      %s112 = sadd.s32 %s111, 1
      %s113 = scalar_select %p110, %s111, %s112
      %p116 = pneg %p110
      %p117 = scmp.eq.s32.totalorder %s17, 7
      %p118 = por %p116, %p117
      %p119 = scmp.ne.s32.totalorder %s111, %s114
      %p120 = scmp.eq.s32.totalorder %s17, 0
      %p121 = por %p119, %p120
      %p122 = scmp.ne.s32.totalorder %s111, %s114
      %p123 = scmp.eq.s32.totalorder %s22, 7
      %p124 = por %p122, %p123
      %p125 = scmp.ne.s32.totalorder %s114, %s115
      %p126 = scmp.eq.s32.totalorder %s22, 0
      %p127 = por %p125, %p126
      %p128 = scmp.ne.s32.totalorder %s114, %s115
      %p129 = scmp.eq.s32.totalorder %s23, 7
      %p130 = por %p128, %p129
      %p132 = scmp.ne.s32.totalorder %s115, %s131
      %p133 = scmp.eq.s32.totalorder %s23, 0
      %p134 = por %p132, %p133
      %p135 = scmp.le.s32.totalorder 1, %s17
      %p136 = scmp.lt.s32.totalorder %s17, 9
      %p137 = pnand %p135, %p136
      %p138 = pneg %p137
      // Predicated region
      $region9: #{tpu_custom_call.1} parent=5 // pred_check
        _
      $region10: #{tpu_custom_call.1} parent=5 // pred_check_branch
        %140 = sbr.rel (%p137) target = $region12
      $region11: #{tpu_custom_call.1} parent=5 // pred_region
        %s141 = ssub.s32 %s17, 1
        // Predicated region
        $region13: #{tpu_custom_call.1} parent=11 // pred_check
          %p142 = pneg %p50
        $region14: #{tpu_custom_call.1} parent=11 // pred_check_branch
          %144 = sbr.rel (%p142) target = $region16
        $region15: #{tpu_custom_call.1} parent=11 // pred_region
          _
        $region16: #{tpu_custom_call.1} parent=11 // pred_fallthru
          _
        // Predicated region
        $region17: #{tpu_custom_call.1} parent=11 // pred_check
          %p145 = pneg %p71
        $region18: #{tpu_custom_call.1} parent=11 // pred_check_branch
          %147 = sbr.rel (%p145) target = $region20
        $region19: #{tpu_custom_call.1} parent=11 // pred_region
          %s149 = ssub.s32 128, 128
          %150 = vsyncadd [#allocation4], %s149
          %s152 = sshll.u32 [#allocation3], 4
          %s153 = int_to_ptr.vmem [resolvable:$true] %s152
          %155 = dma.hbm_to_vmem [thread:$0]  %s1, 128, %s153, [#allocation4]
        $region20: #{tpu_custom_call.1} parent=11 // pred_fallthru
          _
      $region12: #{tpu_custom_call.1} parent=5 // pred_fallthru
        _
      %p156 = scmp.lt.s32.totalorder %s17, 8
      // Predicated region
      $region21: #{tpu_custom_call.1} parent=5 // pred_check
        %p157 = pneg %p156
      $region22: #{tpu_custom_call.1} parent=5 // pred_check_branch
        %159 = sbr.rel (%p157) target = $region24
      $region23: #{tpu_custom_call.1} parent=5 // pred_region
        // Predicated region
        $region25: #{tpu_custom_call.1} parent=23 // pred_check
          %p160 = pneg %p93
        $region26: #{tpu_custom_call.1} parent=23 // pred_check_branch
          %162 = sbr.rel (%p160) target = $region28
        $region27: #{tpu_custom_call.1} parent=23 // pred_region
          %s163 = sand.u32 %s83, 1
          %s164 = scalar_lea.sflag [#allocation7], %s163
          %s165 = sand.u32 %s83, 1
          %s166 = smul.addr %s165, 32
          %s167 = scalar_lea.vmem [#allocation6], %s166
          %s169 = ssub.s32 512, 512
          %170 = vsyncadd %s164, %s169
          %s171 = smul.addr %s24, 16
          %s172 = sadd.s32 %s25, %s171
          %s173 = smul.addr %s172, 128
          %s174 = scalar_lea.hbm %s2, %s173
          %s175 = sshll.u32 %s167, 4
          %s176 = int_to_ptr.vmem [resolvable:$true] %s175
          %181 = dma.hbm_to_vmem [thread:$0]  %s174, 512, %s176, %s164, 512, 128, 8
        $region28: #{tpu_custom_call.1} parent=23 // pred_fallthru
          _
      $region24: #{tpu_custom_call.1} parent=5 // pred_fallthru
        _
      %p182 = scmp.le.s32.totalorder 1, %s17
      %p183 = scmp.lt.s32.totalorder %s17, 9
      %p184 = pnand %p182, %p183
      %p185 = pneg %p184
      // Predicated region
      $region29: #{tpu_custom_call.1} parent=5 // pred_check
        _
      $region30: #{tpu_custom_call.1} parent=5 // pred_check_branch
        %187 = sbr.rel (%p184) target = $region32
      $region31: #{tpu_custom_call.1} parent=5 // pred_region
        %s188 = ssub.s32 %s17, 1
        // Predicated region
        $region33: #{tpu_custom_call.1} parent=31 // pred_check
          %p189 = pneg %p71
        $region34: #{tpu_custom_call.1} parent=31 // pred_check_branch
          %191 = sbr.rel (%p189) target = $region36
        $region35: #{tpu_custom_call.1} parent=31 // pred_region
          %192 = dma.done [#allocation4], 128
        $region36: #{tpu_custom_call.1} parent=31 // pred_fallthru
          _
        %s193 = sand.u32 %s86, 1
        %s194 = scalar_lea.sflag [#allocation7], %s193
        %s195 = sand.u32 %s86, 1
        %s196 = smul.addr %s195, 32
        %s197 = scalar_lea.vmem [#allocation6], %s196
        // Predicated region
        $region37: #{tpu_custom_call.1} parent=31 // pred_check
          %p198 = pneg %p99
        $region38: #{tpu_custom_call.1} parent=31 // pred_check_branch
          %200 = sbr.rel (%p198) target = $region40
        $region39: #{tpu_custom_call.1} parent=31 // pred_region
          %201 = dma.done %s194, 512
        $region40: #{tpu_custom_call.1} parent=31 // pred_fallthru
          _
        %p202 = pneg %p50
        %p203 = pneg %p47
        %p204 = pneg %p71
        %p205 = pneg %p68
        %s206 = sand.u32 %s86, 1
        %s207 = scalar_lea.sflag [#allocation7], %s206
        %s208 = sand.u32 %s86, 1
        %s209 = smul.addr %s208, 32
        %s210 = scalar_lea.vmem [#allocation6], %s209
        %p211 = pneg %p99
        %p212 = pneg %p96
        %p213 = pneg %p127
        %p214 = pneg %p124
        %s215 = sand.u32 %s114, 1
        %s216 = scalar_lea.sflag [#allocation5], %s215
        %s217 = sand.u32 %s114, 1
        %s218 = smul.addr %s217, 8
        %s219 = scalar_lea.vmem [#allocation8], %s218
        %v220 = vld [vmem:[#allocation3] sm:$0xff]
        %v221 = vld [vmem:[%s197] sm:$0xff]
        %v222 = vld [vmem:[%s197 + $0x8] sm:$0xff]
        %v223 = vld [vmem:[%s197 + $0x10] sm:$0xff]
        %v224 = vld [vmem:[%s197 + $0x18] sm:$0xff]
        %vm225 = vcmask 261120
        %v227 = vsel %vm225, %v220, 0
        %229 = vmatprep.subr.mxu0 0.0
        %230 = vmatpush1.msra.mxu0 %v221
        %231 = vmatprep.subr.mxu0 0.0
        %232 = vmatpush1.msra.mxu0 %v222
        %233 = vmatprep.subr.mxu0 0.0
        %234 = vmatpush1.msra.mxu0 %v223
        %235 = vmatprep.subr.mxu0 0.0
        %236 = vmatpush1.msra.mxu0 %v224
        %237 = vmatprep.subr.mxu0 0.0
        %238 = vmatpush1.msra.mxu0 0.0
        %239 = vmatprep.subr.mxu0 0.0
        %240 = vmatpush1.msra.mxu0 0.0
        %241 = vmatprep.subr.mxu0 0.0
        %242 = vmatpush1.msra.mxu0 0.0
        %243 = vmatprep.subr.mxu0 0.0
        %244 = vmatpush1.msra.mxu0 0.0
        %245 = vmatprep.subr.mxu0 0.0
        %246 = vmatpush1.msra.mxu0 0.0
        %247 = vmatprep.subr.mxu0 0.0
        %248 = vmatpush1.msra.mxu0 0.0
        %249 = vmatprep.subr.mxu0 0.0
        %250 = vmatpush1.msra.mxu0 0.0
        %251 = vmatprep.subr.mxu0 0.0
        %252 = vmatpush1.msra.mxu0 0.0
        %253 = vmatprep.subr.mxu0 0.0
        %254 = vmatpush1.msra.mxu0 0.0
        %255 = vmatprep.subr.mxu0 0.0
        %256 = vmatpush1.msra.mxu0 0.0
        %257 = vmatprep.subr.mxu0 0.0
        %258 = vmatpush1.msra.mxu0 0.0
        %259 = vmatprep.subr.mxu0 0.0
        %260 = vmatpush1.msra.mxu0 0.0
        %261 = vmatprep.subr.mxu0 0.0
        %262 = vmatpush1.msra.mxu0 0.0
        %263 = vmatprep.subr.mxu0 0.0
        %264 = vmatpush1.msra.mxu0 0.0
        %265 = vmatprep.subr.mxu0 0.0
        %266 = vmatpush1.msra.mxu0 0.0
        %267 = vmatprep.subr.mxu0 0.0
        %268 = vmatpush1.msra.mxu0 0.0
        %269 = vmatprep.subr.mxu0 0.0
        %270 = vmatpush1.msra.mxu0 0.0
        %271 = vmatprep.subr.mxu0 0.0
        %272 = vmatpush1.msra.mxu0 0.0
        %273 = vmatprep.subr.mxu0 0.0
        %274 = vmatpush1.msra.mxu0 0.0
        %275 = vmatprep.subr.mxu0 0.0
        %276 = vmatpush1.msra.mxu0 0.0
        %277 = vmatprep.subr.mxu0 0.0
        %278 = vmatpush1.msra.mxu0 0.0
        %279 = vmatprep.subr.mxu0 0.0
        %280 = vmatpush1.msra.mxu0 0.0
        %281 = vmatprep.subr.mxu0 0.0
        %282 = vmatpush1.msra.mxu0 0.0
        %283 = vmatprep.subr.mxu0 0.0
        %284 = vmatpush1.msra.mxu0 0.0
        %285 = vmatprep.subr.mxu0 0.0
        %286 = vmatpush1.msra.mxu0 0.0
        %287 = vmatprep.subr.mxu0 0.0
        %288 = vmatpush1.msra.mxu0 0.0
        %289 = vmatprep.subr.mxu0 0.0
        %290 = vmatpush1.msra.mxu0 0.0
        %291 = vmatprep.subr.mxu0 0.0
        %292 = vmatpush1.msra.mxu0 0.0
        %293 = vmatprep.mubr.f32.mxu0 0.0
        %294 = vmatmul.mubr.f32.gmra.mrb[0].mxu0 %v227
        %v295 = vpop.f32.mrb[0].mxu0
        %v296 = vadd.f32 0.0, %v295
        %v297 = vpop.f32.mrb[0].mxu0
        %298 = vdwg.mxu0
        %s299 = sld [smem:[#allocation2]]
        %vm300 = vcmp.gt.f32.partialorder %v296, 0.0
        %v301 = vstv %s299
        %v302 = vmul.f32 %v301, %v296
        %v303 = vsel %vm300, %v296, %v302
        %304 = vst [vmem:[%s219] sm:$0xff] %v303
        %s305 = sand.u32 %s114, 1
        %s306 = scalar_lea.sflag [#allocation5], %s305
        %s307 = sand.u32 %s114, 1
        %s308 = smul.addr %s307, 8
        %s309 = scalar_lea.vmem [#allocation8], %s308
        // Predicated region
        $region41: #{tpu_custom_call.1} parent=31 // pred_check
          %p310 = pneg %p124
        $region42: #{tpu_custom_call.1} parent=31 // pred_check_branch
          %312 = sbr.rel (%p310) target = $region44
        $region43: #{tpu_custom_call.1} parent=31 // pred_region
          %s314 = ssub.s32 128, 128
          %315 = vsyncadd %s306, %s314
          %s316 = smul.addr %s26, 4
          %s317 = sadd.s32 %s27, %s316
          %s318 = smul.addr %s317, 128
          %s319 = scalar_lea.hbm %s3, %s318
          %s321 = sshll.u32 %s309, 4
          %s322 = int_to_ptr.vmem [resolvable:$true] %s321
          %324 = dma.vmem_to_hbm [thread:$0]  %s322, 128, %s319, %s306
        $region44: #{tpu_custom_call.1} parent=31 // pred_fallthru
          _
      $region32: #{tpu_custom_call.1} parent=5 // pred_fallthru
        _
      %p325 = scmp.le.s32.totalorder 2, %s17
      // Predicated region
      $region45: #{tpu_custom_call.1} parent=5 // pred_check
        %p326 = pneg %p325
      $region46: #{tpu_custom_call.1} parent=5 // pred_check_branch
        %328 = sbr.rel (%p326) target = $region48
      $region47: #{tpu_custom_call.1} parent=5 // pred_region
        %s329 = ssub.s32 %s17, 2
        // Predicated region
        $region49: #{tpu_custom_call.1} parent=47 // pred_check
          %p330 = pneg %p130
        $region50: #{tpu_custom_call.1} parent=47 // pred_check_branch
          %332 = sbr.rel (%p330) target = $region52
        $region51: #{tpu_custom_call.1} parent=47 // pred_region
          %s333 = sand.u32 %s115, 1
          %s334 = scalar_lea.sflag [#allocation5], %s333
          %s335 = sand.u32 %s115, 1
          %s336 = smul.addr %s335, 8
          %s337 = scalar_lea.vmem [#allocation8], %s336
          %338 = dma.done %s334, 128
        $region52: #{tpu_custom_call.1} parent=47 // pred_fallthru
          _
      $region48: #{tpu_custom_call.1} parent=5 // pred_fallthru
        _
    $region6: #{tpu_custom_call.1} parent=1 // loop_footer
      %s21 = sadd.s32 1, %s17
    $region7: #{tpu_custom_call.1} parent=1 // loop_footer_branch
      %16 = sbr.rel target = $region3
    $region8: #{tpu_custom_call.1} parent=1 // loop_exit
      _
    %339 = vsyncpa [#allocation4], 1
    %s340 = scalar_lea.sflag [#allocation4], 1
    %341 = vsyncpa %s340, 1
    %342 = vsyncpa [#allocation7], 1
    %s343 = scalar_lea.sflag [#allocation7], 1
    %344 = vsyncpa %s343, 1
    %345 = vsyncpa [#allocation5], 1
    %s346 = scalar_lea.sflag [#allocation5], 1
    %347 = vsyncpa %s346, 1

</llo_original>
